<compile_context>
chip_gen: v7x
topology: tpu7x:2x2x1
jax: 0.10.0
libtpu: 0.0.40
codegen_flags: <defaults>
</compile_context>

<pallas_src>
import functools

import jax
import jax.numpy as jnp
from jax import lax
from jax.experimental import pallas as pl
from jax.experimental.pallas import tpu as pltpu

KSIZE = 4          # conv kernel size
PAD = 1            # conv padding
NEG_SLOPE = 0.2    # LeakyReLU slope
BN_EPS = 1e-5
TILE_M = 256       # lane-axis tile (multiple of 128); 512-1024 for big images
VMEM_LIMIT = 32 * 1024 * 1024   # within scoped limits on v5e/v6e/v7x


def _leaky(y):
    return jnp.where(y >= 0.0, y, NEG_SLOPE * y)


# -----------------------------------------------------------------------------
# Kernel 1a: conv-as-matmul + bias (+ LeakyReLU) for layers WITHOUT BatchNorm.
#   at_ref: (Kd, TM)  bf16  im2col^T tile (M on the lane axis)
#   wt_ref: (Cout, Kd) bf16
#   b_ref : (Cout, 1)  f32  conv bias
#   y_ref : (Cout, TM) f32
# -----------------------------------------------------------------------------
def _conv_bias_kernel(at_ref, wt_ref, b_ref, y_ref, *, act):
    y = jnp.dot(wt_ref[...], at_ref[...], preferred_element_type=jnp.float32)
    y = y + b_ref[...]
    if act:
        y = _leaky(y)
    y_ref[...] = y.astype(y_ref.dtype)


# -----------------------------------------------------------------------------
# Kernel 1b: conv-as-matmul + per-channel sum / sum-of-squares accumulation
# (pass 1 of training-mode BatchNorm).  Stats accumulate across ALL M tiles.
# -----------------------------------------------------------------------------
def _conv_bn_stats_kernel(at_ref, wt_ref, y_ref, s1_ref, s2_ref):
    y = jnp.dot(wt_ref[...], at_ref[...], preferred_element_type=jnp.float32)
    y_ref[...] = y

    @pl.when(pl.program_id(0) == 0)
    def _():
        s1_ref[...] = jnp.zeros_like(s1_ref)
        s2_ref[...] = jnp.zeros_like(s2_ref)

    s1_ref[...] += jnp.sum(y, axis=1, keepdims=True)
    s2_ref[...] += jnp.sum(y * y, axis=1, keepdims=True)


# -----------------------------------------------------------------------------
# Kernel 2: BatchNorm finalize (pass 2) + affine + LeakyReLU, tiled over M.
# -----------------------------------------------------------------------------
def _bn_finalize_kernel(y_ref, s1_ref, s2_ref, g_ref, b_ref, o_ref, *, count, act):
    inv_count = 1.0 / count
    mean = s1_ref[...] * inv_count                       # (Cout, 1)
    var = s2_ref[...] * inv_count - mean * mean          # biased variance
    scale = lax.rsqrt(var + BN_EPS) * g_ref[...]
    out = (y_ref[...] - mean) * scale + b_ref[...]
    if act:
        out = _leaky(out)
    o_ref[...] = out.astype(o_ref.dtype)


# -----------------------------------------------------------------------------
# One Discriminator layer: Conv2d(k=4, s=stride, p=1) [+BN(train)] [+LeakyReLU]
# Activations are (Cin, N, H, W) f32 (channels leading) between layers.
# -----------------------------------------------------------------------------
def _conv_layer(x_cnhw, w_oihw, gamma, shift, *, stride, bn, act, tile_m=TILE_M):
    cin, n, h, wdt = x_cnhw.shape
    cout = w_oihw.shape[0]
    ho = (h + 2 * PAD - KSIZE) // stride + 1
    wo = (wdt + 2 * PAD - KSIZE) // stride + 1
    m = n * ho * wo
    kd = KSIZE * KSIZE * cin

    # im2col^T (Kd, M) in JAX glue; matmul + epilogue happen inside Pallas.
    # TODO(synk): move this tap loop into the kernel to avoid the K-fold HBM blow-up.
    xp = jnp.pad(x_cnhw, ((0, 0), (0, 0), (PAD, PAD), (PAD, PAD)))
    taps = []
    for kh in range(KSIZE):
        for kw in range(KSIZE):
            sl = xp[:, :,
                    kh: kh + stride * (ho - 1) + 1: stride,
                    kw: kw + stride * (wo - 1) + 1: stride]     # (Cin, N, Ho, Wo)
            taps.append(sl.reshape(cin, m))
    at = jnp.concatenate(taps, axis=0).astype(jnp.bfloat16)     # (Kd, M) bf16
    # (Cout, Cin, KH, KW) -> (Cout, KH, KW, Cin) -> (Cout, Kd): matches (kh, kw, ci)
    wt = jnp.transpose(w_oihw, (0, 2, 3, 1)).reshape(cout, kd).astype(jnp.bfloat16)

    # Tile M (the lane axis). Zero-padded columns contribute exactly zero to the
    # BN sums (no conv bias on BN layers), so dividing by the true M is correct.
    if m > tile_m:
        m_pad = ((m + tile_m - 1) // tile_m) * tile_m
        blk_m = tile_m
        if m_pad != m:
            at = jnp.pad(at, ((0, 0), (0, m_pad - m)))
    else:
        m_pad, blk_m = m, m
    n_tiles = m_pad // blk_m

    cost = pl.CostEstimate(
        flops=2 * m_pad * kd * cout,
        transcendentals=0,
        bytes_accessed=at.size * 2 + wt.size * 2 + m_pad * cout * 4)

    a_spec = pl.BlockSpec((kd, blk_m), lambda i: (0, i))
    w_spec = pl.BlockSpec((cout, kd), lambda i: (0, 0))
    y_spec = pl.BlockSpec((cout, blk_m), lambda i: (0, i))
    c_spec = pl.BlockSpec((cout, 1), lambda i: (0, 0))

    if bn:
        # Pass 1: conv + per-channel sum / sumsq accumulated across M tiles.
        y, s1, s2 = pl.pallas_call(
            _conv_bn_stats_kernel,
            out_shape=(jax.ShapeDtypeStruct((cout, m_pad), jnp.float32),
                       jax.ShapeDtypeStruct((cout, 1), jnp.float32),
                       jax.ShapeDtypeStruct((cout, 1), jnp.float32)),
            grid=(n_tiles,),
            in_specs=[a_spec, w_spec],
            out_specs=(y_spec, c_spec, c_spec),
            compiler_params=pltpu.CompilerParams(
                dimension_semantics=("arbitrary",),   # stats accumulate across tiles
                vmem_limit_bytes=VMEM_LIMIT),
            cost_estimate=cost,
        )(at, wt)
        # Pass 2: normalize over ALL N*Ho*Wo positions + affine + LeakyReLU.
        out = pl.pallas_call(
            functools.partial(_bn_finalize_kernel, count=float(m), act=act),
            out_shape=jax.ShapeDtypeStruct((cout, m_pad), jnp.float32),
            grid=(n_tiles,),
            in_specs=[y_spec, c_spec, c_spec, c_spec, c_spec],
            out_specs=y_spec,
            compiler_params=pltpu.CompilerParams(
                dimension_semantics=("parallel",),
                vmem_limit_bytes=VMEM_LIMIT),
        )(y, s1, s2, gamma.reshape(cout, 1), shift.reshape(cout, 1))
    else:
        out = pl.pallas_call(
            functools.partial(_conv_bias_kernel, act=act),
            out_shape=jax.ShapeDtypeStruct((cout, m_pad), jnp.float32),
            grid=(n_tiles,),
            in_specs=[a_spec, w_spec, c_spec],
            out_specs=y_spec,
            compiler_params=pltpu.CompilerParams(
                dimension_semantics=("parallel",),
                vmem_limit_bytes=VMEM_LIMIT),
            cost_estimate=cost,
        )(at, wt, shift.reshape(cout, 1))

    return out[:, :m].reshape(cout, n, ho, wo)


# -----------------------------------------------------------------------------
# Parameter construction (deterministic, mirrors Discriminator.__init__ shapes)
# -----------------------------------------------------------------------------
def make_params(key, inp, filters=8, n_down=3):
    cfg = [dict(cin=inp, cout=filters, stride=2, bn=False, act=True)]
    for i in range(n_down):
        cfg.append(dict(cin=filters * 2 ** i, cout=filters * 2 ** (i + 1),
                        stride=1 if i == n_down - 1 else 2, bn=True, act=True))
    cfg.append(dict(cin=filters * 2 ** n_down, cout=1, stride=2, bn=False, act=False))

    params = []
    for layer in cfg:
        key, kw_, kb_, kg_, kbt_ = jax.random.split(key, 5)
        cin, cout = layer["cin"], layer["cout"]
        w = 0.1 * jax.random.normal(kw_, (cout, cin, KSIZE, KSIZE), jnp.float32)
        if layer["bn"]:
            scale = 1.0 + 0.1 * jax.random.normal(kg_, (cout,), jnp.float32)  # gamma
            shift = 0.1 * jax.random.normal(kbt_, (cout,), jnp.float32)       # beta
        else:
            scale = jnp.ones((cout,), jnp.float32)                            # unused
            shift = 0.1 * jax.random.normal(kb_, (cout,), jnp.float32)        # conv bias
        params.append(dict(w=w, scale=scale, shift=shift, **layer))
    return params


# -----------------------------------------------------------------------------
# Forward passes
# -----------------------------------------------------------------------------
def discriminator_forward(x_nchw, params):
    x = jnp.transpose(x_nchw, (1, 0, 2, 3))   # NCHW -> CNHW (channels leading)
    for p in params:
        x = _conv_layer(x, p["w"], p["scale"], p["shift"],
                        stride=p["stride"], bn=p["bn"], act=p["act"])
    return jnp.transpose(x, (1, 0, 2, 3))     # CNHW -> NCHW


def reference_forward(x_nchw, params):
    """Plain-JAX reference (lax.conv) with matching bf16-operand / f32-accum math."""
    y = x_nchw
    for p in params:
        y = lax.conv_general_dilated(
            y.astype(jnp.bfloat16), p["w"].astype(jnp.bfloat16),
            (p["stride"], p["stride"]), [(PAD, PAD), (PAD, PAD)],
            dimension_numbers=("NCHW", "OIHW", "NCHW"),
            preferred_element_type=jnp.float32)
        if p["bn"]:
            mean = jnp.mean(y, axis=(0, 2, 3), keepdims=True)
            var = jnp.mean(jnp.square(y - mean), axis=(0, 2, 3), keepdims=True)
            y = (y - mean) / jnp.sqrt(var + BN_EPS)
            y = y * p["scale"].reshape(1, -1, 1, 1) + p["shift"].reshape(1, -1, 1, 1)
        else:
            y = y + p["shift"].reshape(1, -1, 1, 1)
        if p["act"]:
            y = jnp.where(y >= 0.0, y, NEG_SLOPE * y)
    return y


if __name__ == "__main__":
    key = jax.random.PRNGKey(0)
    k_x, k_p = jax.random.split(key)

    # Small shapes consistent with the module (spatial must be >= 32 so the
    # stride pattern [2,2,2,1,2] keeps valid output sizes).  64x64 exercises
    # both the multi-tile non-BN path (layer 0) and multi-tile BN path (layer 1).
    x = jax.random.normal(k_x, (2, 4, 64, 64), jnp.float32)   # NCHW, like PyTorch
    params = make_params(k_p, inp=4, filters=8, n_down=3)

    out = discriminator_forward(x, params)
    out = jax.block_until_ready(out)

    ref = reference_forward(x, params)
    assert out.shape == ref.shape == (2, 1, 3, 3), out.shape
    assert jnp.allclose(out, ref, atol=1e-2, rtol=1e-2), (
        f"max abs diff {jnp.max(jnp.abs(out - ref))}")

    print("KERNEL_OK")
</pallas_src>

<mosaic_0001>
module attributes {stable_mosaic.version = 11 : i64} {
  func.func @_conv_bias_kernel(%arg0: i32, %arg1: memref<64x256xbf16, #tpu.memory_space<vmem>>, %arg2: memref<8x64xbf16, #tpu.memory_space<vmem>>, %arg3: memref<8x1xf32, #tpu.memory_space<vmem>>, %arg4: memref<8x256xf32, #tpu.memory_space<vmem>>) attributes {dimension_semantics = [#tpu.dimension_semantics<parallel>], iteration_bounds = array<i64: 8>, scalar_prefetch = 0 : i64, scratch_operands = 0 : i64, tpu.core_type = #tpu.core_type<tc>, window_params = [{transform_indices = @transform_0, window_bounds = array<i64: 64, 256>}, {pipeline_mode = #tpu.pipeline_mode<synchronous>, transform_indices = @transform_1, window_bounds = array<i64: 8, 64>}, {pipeline_mode = #tpu.pipeline_mode<synchronous>, transform_indices = @transform_2, window_bounds = array<i64: 8, 1>}, {transform_indices = @transform_3, window_bounds = array<i64: 8, 256>}]} {
    %c0 = arith.constant 0 : index
    %c0_0 = arith.constant 0 : index
    %0 = vector.load %arg2[%c0, %c0_0] : memref<8x64xbf16, #tpu.memory_space<vmem>>, vector<8x64xbf16>
    %c0_1 = arith.constant 0 : index
    %c0_2 = arith.constant 0 : index
    %1 = vector.load %arg1[%c0_1, %c0_2] : memref<64x256xbf16, #tpu.memory_space<vmem>>, vector<64x256xbf16>
    %cst = arith.constant dense<0.000000e+00> : vector<8x256xf32>
    %2 = tpu.matmul %0, %1, %cst {dimension_numbers = #tpu.dot_dimension_numbers<[1], [0], [0], [1], [0, 0, 1, 1], [], []>} : vector<8x64xbf16>, vector<64x256xbf16>, vector<8x256xf32> -> vector<8x256xf32>
    %c0_3 = arith.constant 0 : index
    %c0_4 = arith.constant 0 : index
    %3 = vector.load %arg3[%c0_3, %c0_4] : memref<8x1xf32, #tpu.memory_space<vmem>>, vector<8x1xf32>
    %4 = vector.broadcast %3 : vector<8x1xf32> to vector<8x256xf32>
    %5 = arith.addf %2, %4 : vector<8x256xf32>
    %cst_5 = arith.constant 0.000000e+00 : f32
    %6 = vector.broadcast %cst_5 : f32 to vector<8x256xf32>
    %7 = arith.cmpf oge, %5, %6 : vector<8x256xf32>
    %cst_6 = arith.constant 2.000000e-01 : f32
    %8 = vector.broadcast %cst_6 : f32 to vector<8x256xf32>
    %9 = arith.mulf %8, %5 : vector<8x256xf32>
    %10 = arith.select %7, %5, %9 : vector<8x256xi1>, vector<8x256xf32>
    %c0_7 = arith.constant 0 : index
    %c0_8 = arith.constant 0 : index
    %11 = vector.load %arg4[%c0_7, %c0_8] : memref<8x256xf32, #tpu.memory_space<vmem>>, vector<8x256xf32>
    tpu.vector_store %arg4[%c0_7, %c0_8], %10 {strides = array<i32>} : memref<8x256xf32, #tpu.memory_space<vmem>>, vector<8x256xf32>,
    return
  }
  func.func @transform_0(%arg0: i32) -> (i32, i32) {
    %c0_i32 = arith.constant 0 : i32
    %c0_i32_0 = arith.constant 0 : i32
    return %c0_i32, %arg0 : i32, i32
  }
  func.func @transform_1(%arg0: i32) -> (i32, i32) {
    %c0_i32 = arith.constant 0 : i32
    %c0_i32_0 = arith.constant 0 : i32
    %c0_i32_1 = arith.constant 0 : i32
    return %c0_i32, %c0_i32_0 : i32, i32
  }
  func.func @transform_2(%arg0: i32) -> (i32, i32) {
    %c0_i32 = arith.constant 0 : i32
    %c0_i32_0 = arith.constant 0 : i32
    %c0_i32_1 = arith.constant 0 : i32
    return %c0_i32, %c0_i32_0 : i32, i32
  }
  func.func @transform_3(%arg0: i32) -> (i32, i32) {
    %c0_i32 = arith.constant 0 : i32
    %c0_i32_0 = arith.constant 0 : i32
    return %c0_i32, %arg0 : i32, i32
  }
}

</mosaic_0001>

<llo_original>
// kernel: tpu_custom_call.1
$region0: #{tpu_custom_call.1}
  #allocation0 [shape = 'u32[]', space=smem, size = 0x4, offset = 0x4, fixed_abs, tag = 'smem constant byte address 0x4 - core index']
  #allocation1 [shape = 'u32[144,128]{1,0:T(1,128)}', space=vmem, size = 0x12000, scoped, tag = 'internal scratch']
  %s0 = inlined_call_operand.hbm [shape: bf16[64,2048], index: 0, kind: input, shape index: {}]
  %s1 = inlined_call_operand.vmem [shape: bf16[8,64], index: 1, kind: input, shape index: {}]
  %s2 = inlined_call_operand.vmem [shape: f32[8,1], index: 2, kind: input, shape index: {}]
  %s3 = inlined_call_operand.hbm [shape: f32[8,2048], index: 3, kind: output, shape index: {}]
  %s4 = sld [smem:[#allocation0]]
  $region49: #{tpu_custom_call.1} parent=0
    _
  %s6 = ssub.s32 1, %s4
  %s7 = scalar_select 0, %s6, %s4
  $region1: #{tpu_custom_call.1} parent=0
    #allocation2 [shape = 'u8[65536]{0}', space=vmem, size = 0x10000, scoped, tag = 'input window, operand 0']
    #allocation3 [shape = 's32[2]{0}', space=sflag, size = 0x8, scoped, tag = 'scoped memory for tpu_custom_call.1']
    #allocation4 [shape = 's32[2]{0}', space=sflag, size = 0x8, scoped, tag = 'scoped memory for tpu_custom_call.1']
    #allocation5 [shape = 'u8[16384]{0}', space=vmem, size = 0x4000, scoped, tag = 'output window, operand 0']
    %8 = vsyncpa [#allocation3], 0
    %s9 = scalar_lea.sflag [#allocation3], 1
    %10 = vsyncpa %s9, 0
    %11 = vsyncpa [#allocation4], 0
    %s12 = scalar_lea.sflag [#allocation4], 1
    %13 = vsyncpa %s12, 0
    loop: start=0, step=1, limit=10
    $region2: #{tpu_custom_call.1} parent=1 // loop_pre_header
      _
    $region3: #{tpu_custom_call.1} parent=1 // loop_header
      %s15 = sphi 0, %s19
      %p16 = scmp.ge.s32.totalorder %s15, 10
      %s25 = sphi 0, %s27
      %s28 = sphi 0, %s25
      %s29 = sphi 0, %s28
      %s45 = sphi 0, %s29
      %s49 = sphi 0, %s49
      %s51 = sphi 0, %s49
      %s52 = sphi 0, %s51
      %s66 = sphi 0, %s52
      %s70 = sphi 0, %s70
      %s72 = sphi 0, %s70
      %s73 = sphi 0, %s72
      %s87 = sphi 0, %s73
      %s93 = sphi 0, %s95
      %s96 = sphi 0, %s93
      %s97 = sphi 0, %s96
      %s113 = sphi 0, %s97
    $region4: #{tpu_custom_call.1} parent=1 // loop_header_branch
      %18 = sbr.rel (%p16) target = $region8
    $region5: #{tpu_custom_call.1} parent=1 // loop_body
      %s20 = ssub.s32 %s15, 1
      %s21 = ssub.s32 %s15, 2
      %s22 = sadd.s32 %s15, 1
      %s23 = ssub.s32 %s15, %s22
      %p24 = scmp.eq.s32.totalorder %s23, 0
      %s26 = sadd.s32 %s25, 1
      %s27 = scalar_select %p24, %s25, %s26
      %p30 = pneg %p24
      %p31 = scmp.eq.s32.totalorder %s15, 7
      %p32 = por %p30, %p31
      %p33 = scmp.ne.s32.totalorder %s25, %s28
      %p34 = scmp.eq.s32.totalorder %s15, 0
      %p35 = por %p33, %p34
      %p36 = scmp.ne.s32.totalorder %s25, %s28
      %p37 = scmp.eq.s32.totalorder %s20, 7
      %p38 = por %p36, %p37
      %p39 = scmp.ne.s32.totalorder %s28, %s29
      %p40 = scmp.eq.s32.totalorder %s20, 0
      %p41 = por %p39, %p40
      %p42 = scmp.ne.s32.totalorder %s28, %s29
      %p43 = scmp.eq.s32.totalorder %s21, 7
      %p44 = por %p42, %p43
      %p46 = scmp.ne.s32.totalorder %s29, %s45
      %p47 = scmp.eq.s32.totalorder %s21, 0
      %p48 = por %p46, %p47
      %s50 = sadd.s32 %s49, 1
      %p53 = scmp.eq.s32.totalorder %s15, 7
      %p54 = scmp.ne.s32.totalorder %s49, %s51
      %p55 = scmp.eq.s32.totalorder %s15, 0
      %p56 = por %p54, %p55
      %p57 = scmp.ne.s32.totalorder %s49, %s51
      %p58 = scmp.eq.s32.totalorder %s20, 7
      %p59 = por %p57, %p58
      %p60 = scmp.ne.s32.totalorder %s51, %s52
      %p61 = scmp.eq.s32.totalorder %s20, 0
      %p62 = por %p60, %p61
      %p63 = scmp.ne.s32.totalorder %s51, %s52
      %p64 = scmp.eq.s32.totalorder %s21, 7
      %p65 = por %p63, %p64
      %p67 = scmp.ne.s32.totalorder %s52, %s66
      %p68 = scmp.eq.s32.totalorder %s21, 0
      %p69 = por %p67, %p68
      %s71 = sadd.s32 %s70, 1
      %p74 = scmp.eq.s32.totalorder %s15, 7
      %p75 = scmp.ne.s32.totalorder %s70, %s72
      %p76 = scmp.eq.s32.totalorder %s15, 0
      %p77 = por %p75, %p76
      %p78 = scmp.ne.s32.totalorder %s70, %s72
      %p79 = scmp.eq.s32.totalorder %s20, 7
      %p80 = por %p78, %p79
      %p81 = scmp.ne.s32.totalorder %s72, %s73
      %p82 = scmp.eq.s32.totalorder %s20, 0
      %p83 = por %p81, %p82
      %p84 = scmp.ne.s32.totalorder %s72, %s73
      %p85 = scmp.eq.s32.totalorder %s21, 7
      %p86 = por %p84, %p85
      %p88 = scmp.ne.s32.totalorder %s73, %s87
      %p89 = scmp.eq.s32.totalorder %s21, 0
      %p90 = por %p88, %p89
      %s91 = ssub.s32 %s15, %s22
      %p92 = scmp.eq.s32.totalorder %s91, 0
      %s94 = sadd.s32 %s93, 1
      %s95 = scalar_select %p92, %s93, %s94
      %p98 = pneg %p92
      %p99 = scmp.eq.s32.totalorder %s15, 7
      %p100 = por %p98, %p99
      %p101 = scmp.ne.s32.totalorder %s93, %s96
      %p102 = scmp.eq.s32.totalorder %s15, 0
      %p103 = por %p101, %p102
      %p104 = scmp.ne.s32.totalorder %s93, %s96
      %p105 = scmp.eq.s32.totalorder %s20, 7
      %p106 = por %p104, %p105
      %p107 = scmp.ne.s32.totalorder %s96, %s97
      %p108 = scmp.eq.s32.totalorder %s20, 0
      %p109 = por %p107, %p108
      %p110 = scmp.ne.s32.totalorder %s96, %s97
      %p111 = scmp.eq.s32.totalorder %s21, 7
      %p112 = por %p110, %p111
      %p114 = scmp.ne.s32.totalorder %s97, %s113
      %p115 = scmp.eq.s32.totalorder %s21, 0
      %p116 = por %p114, %p115
      %p117 = scmp.le.s32.totalorder 1, %s15
      %p118 = scmp.lt.s32.totalorder %s15, 9
      %p119 = pnand %p117, %p118
      %p120 = pneg %p119
      // Predicated region
      $region9: #{tpu_custom_call.1} parent=5 // pred_check
        _
      $region10: #{tpu_custom_call.1} parent=5 // pred_check_branch
        %122 = sbr.rel (%p119) target = $region12
      $region11: #{tpu_custom_call.1} parent=5 // pred_region
        %s123 = ssub.s32 %s15, 1
        // Predicated region
        $region13: #{tpu_custom_call.1} parent=11 // pred_check
          %p124 = pneg %p62
        $region14: #{tpu_custom_call.1} parent=11 // pred_check_branch
          %126 = sbr.rel (%p124) target = $region16
        $region15: #{tpu_custom_call.1} parent=11 // pred_region
          _
        $region16: #{tpu_custom_call.1} parent=11 // pred_fallthru
          _
        // Predicated region
        $region17: #{tpu_custom_call.1} parent=11 // pred_check
          %p127 = pneg %p83
        $region18: #{tpu_custom_call.1} parent=11 // pred_check_branch
          %129 = sbr.rel (%p127) target = $region20
        $region19: #{tpu_custom_call.1} parent=11 // pred_region
          _
        $region20: #{tpu_custom_call.1} parent=11 // pred_fallthru
          _
      $region12: #{tpu_custom_call.1} parent=5 // pred_fallthru
        _
      %p130 = scmp.lt.s32.totalorder %s15, 8
      // Predicated region
      $region21: #{tpu_custom_call.1} parent=5 // pred_check
        %p131 = pneg %p130
      $region22: #{tpu_custom_call.1} parent=5 // pred_check_branch
        %133 = sbr.rel (%p131) target = $region24
      $region23: #{tpu_custom_call.1} parent=5 // pred_region
        // Predicated region
        $region25: #{tpu_custom_call.1} parent=23 // pred_check
          %p134 = pneg %p35
        $region26: #{tpu_custom_call.1} parent=23 // pred_check_branch
          %136 = sbr.rel (%p134) target = $region28
        $region27: #{tpu_custom_call.1} parent=23 // pred_region
          %s137 = sand.u32 %s25, 1
          %s138 = scalar_lea.sflag [#allocation3], %s137
          %s139 = sand.u32 %s25, 1
          %s140 = smul.addr %s139, 64
          %s141 = scalar_lea.vmem [#allocation2], %s140
          %s142 = smul.u32 2, %s15
          %s144 = ssub.s32 1024, 1024
          %145 = vsyncadd %s138, %s144
          %s146 = smul.addr %s142, 64
          %s147 = scalar_lea.hbm %s0, %s146
          %s148 = sshll.u32 %s141, 4
          %s149 = int_to_ptr.vmem [resolvable:$true] %s148
          %154 = dma.hbm_to_vmem [thread:$0]  %s147, 1024, %s149, %s138, 1024, 128, 8
        $region28: #{tpu_custom_call.1} parent=23 // pred_fallthru
          _
      $region24: #{tpu_custom_call.1} parent=5 // pred_fallthru
        _
      %p155 = scmp.le.s32.totalorder 1, %s15
      %p156 = scmp.lt.s32.totalorder %s15, 9
      %p157 = pnand %p155, %p156
      %p158 = pneg %p157
      // Predicated region
      $region29: #{tpu_custom_call.1} parent=5 // pred_check
        _
      $region30: #{tpu_custom_call.1} parent=5 // pred_check_branch
        %160 = sbr.rel (%p157) target = $region32
      $region31: #{tpu_custom_call.1} parent=5 // pred_region
        %s161 = ssub.s32 %s15, 1
        %s162 = sand.u32 %s28, 1
        %s163 = scalar_lea.sflag [#allocation3], %s162
        %s164 = sand.u32 %s28, 1
        %s165 = smul.addr %s164, 64
        %s166 = scalar_lea.vmem [#allocation2], %s165
        // Predicated region
        $region33: #{tpu_custom_call.1} parent=31 // pred_check
          %p167 = pneg %p41
        $region34: #{tpu_custom_call.1} parent=31 // pred_check_branch
          %169 = sbr.rel (%p167) target = $region36
        $region35: #{tpu_custom_call.1} parent=31 // pred_region
          %170 = dma.done %s163, 1024
        $region36: #{tpu_custom_call.1} parent=31 // pred_fallthru
          _
        %s171 = sand.u32 %s28, 1
        %s172 = scalar_lea.sflag [#allocation3], %s171
        %s173 = sand.u32 %s28, 1
        %s174 = smul.addr %s173, 64
        %s175 = scalar_lea.vmem [#allocation2], %s174
        %p176 = pneg %p41
        %p177 = pneg %p38
        %p178 = pneg %p62
        %p179 = pneg %p59
        %p180 = pneg %p83
        %p181 = pneg %p80
        %p182 = pneg %p109
        %p183 = pneg %p106
        %s184 = sand.u32 %s96, 1
        %s185 = scalar_lea.sflag [#allocation4], %s184
        %s186 = sand.u32 %s96, 1
        %s187 = smul.addr %s186, 16
        %s188 = scalar_lea.vmem [#allocation5], %s187
        %s189 = smul.u32 2, %s20
        %s190 = smul.u32 2, %s20
        %v192 = vld [vmem:[%s1] sm:$0xf]
        %v193 = vld [vmem:[%s166] sm:$0xff]
        %v194 = vld [vmem:[%s166 + $0x8] sm:$0xff]
        %v195 = vld [vmem:[%s166 + $0x10] sm:$0xff]
        %v196 = vld [vmem:[%s166 + $0x18] sm:$0xff]
        %v197 = vld [vmem:[%s166 + $0x20] sm:$0xff]
        %v198 = vld [vmem:[%s166 + $0x28] sm:$0xff]
        %v199 = vld [vmem:[%s166 + $0x30] sm:$0xff]
        %v200 = vld [vmem:[%s166 + $0x38] sm:$0xff]
        %v201 = vld [vmem:[%s2] sm:$0xff]
        %203 = vset.pattern.permute.xlu0 0
        %204 = vperm.xlu0 %203, %v201
        %v205 = vpop.permute.xlu0 %204
        %v215 = vunpack.c.l.b16 %v193
        %v216 = vunpack.c.h.b16 %v193
        %v217 = vunpack.c.l.b16 %v194
        %v218 = vunpack.c.h.b16 %v194
        %v219 = vunpack.c.l.b16 %v195
        %v220 = vunpack.c.h.b16 %v195
        %v221 = vunpack.c.l.b16 %v196
        %v222 = vunpack.c.h.b16 %v196
        %v223 = vunpack.c.l.b16 %v197
        %v224 = vunpack.c.h.b16 %v197
        %v225 = vunpack.c.l.b16 %v198
        %v226 = vunpack.c.h.b16 %v198
        %v227 = vunpack.c.l.b16 %v199
        %v228 = vunpack.c.h.b16 %v199
        %v229 = vunpack.c.l.b16 %v200
        %v230 = vunpack.c.h.b16 %v200
        %v231 = vpack.c.b16 %v217, %v215
        %v232 = vpack.c.b16 %v218, %v216
        %v233 = vpack.c.b16 %v221, %v219
        %v234 = vpack.c.b16 %v222, %v220
        %v235 = vpack.c.b16 %v225, %v223
        %v236 = vpack.c.b16 %v226, %v224
        %v237 = vpack.c.b16 %v229, %v227
        %v238 = vpack.c.b16 %v230, %v228
        %vm247 = vcmask 523264
        %v249 = vsel %vm247, %v192, 0
        %251 = vmatprep.subr.bf16.mxu0 %v232
        %252 = vmatpush1.bf16.msra.mxu0 %v231
        %253 = vmatprep.subr.bf16.mxu0 %v234
        %254 = vmatpush1.bf16.msra.mxu0 %v233
        %255 = vmatprep.subr.bf16.mxu0 %v236
        %256 = vmatpush1.bf16.msra.mxu0 %v235
        %257 = vmatprep.subr.bf16.mxu0 %v238
        %258 = vmatpush1.bf16.msra.mxu0 %v237
        %259 = vmatprep.subr.bf16.mxu0 0
        %260 = vmatpush1.bf16.msra.mxu0 0
        %261 = vmatprep.subr.bf16.mxu0 0
        %262 = vmatpush1.bf16.msra.mxu0 0
        %263 = vmatprep.subr.bf16.mxu0 0
        %264 = vmatpush1.bf16.msra.mxu0 0
        %265 = vmatprep.subr.bf16.mxu0 0
        %266 = vmatpush1.bf16.msra.mxu0 0
        %267 = vmatprep.subr.bf16.mxu0 0
        %268 = vmatpush1.bf16.msra.mxu0 0
        %269 = vmatprep.subr.bf16.mxu0 0
        %270 = vmatpush1.bf16.msra.mxu0 0
        %271 = vmatprep.subr.bf16.mxu0 0
        %272 = vmatpush1.bf16.msra.mxu0 0
        %273 = vmatprep.subr.bf16.mxu0 0
        %274 = vmatpush1.bf16.msra.mxu0 0
        %275 = vmatprep.subr.bf16.mxu0 0
        %276 = vmatpush1.bf16.msra.mxu0 0
        %277 = vmatprep.subr.bf16.mxu0 0
        %278 = vmatpush1.bf16.msra.mxu0 0
        %279 = vmatprep.subr.bf16.mxu0 0
        %280 = vmatpush1.bf16.msra.mxu0 0
        %281 = vmatprep.subr.bf16.mxu0 0
        %282 = vmatpush1.bf16.msra.mxu0 0
        %283 = vmatprep.mubr.bf16.mxu0 0
        %284 = vmatmul.mubr.bf16.gmra.mrb[0].mxu0 %v249
        %v285 = vpop.f32.mrb[0].mxu0
        %v286 = vadd.f32 %v205, %v285
        %v287 = vpop.f32.mrb[0].mxu0
        %v288 = vadd.f32 %v205, %v287
        %v289 = vpop.f32.mrb[0].mxu0
        %v290 = vpop.f32.mrb[0].mxu0
        %291 = vdwg.mxu0
        %vm292 = vcmp.ge.f32.partialorder %v286, 0.0
        %vm293 = vcmp.ge.f32.partialorder %v288, 0.0
        %v294 = vmul.f32 %v286, 0.2
        %v295 = vmul.f32 %v288, 0.2
        %v296 = vsel %vm292, %v286, %v294
        %v297 = vsel %vm293, %v288, %v295
        %298 = vst [vmem:[%s188] sm:$0xff] %v296
        %299 = vst [vmem:[%s188 + $0x8] sm:$0xff] %v297
        %s300 = sand.u32 %s96, 1
        %s301 = scalar_lea.sflag [#allocation4], %s300
        %s302 = sand.u32 %s96, 1
        %s303 = smul.addr %s302, 16
        %s304 = scalar_lea.vmem [#allocation5], %s303
        // Predicated region
        $region37: #{tpu_custom_call.1} parent=31 // pred_check
          %p305 = pneg %p106
        $region38: #{tpu_custom_call.1} parent=31 // pred_check_branch
          %307 = sbr.rel (%p305) target = $region40
        $region39: #{tpu_custom_call.1} parent=31 // pred_region
          %s308 = smul.u32 2, %s20
          %s310 = ssub.s32 256, 256
          %311 = vsyncadd %s301, %s310
          %s312 = smul.addr %s308, 128
          %s313 = scalar_lea.hbm %s3, %s312
          %s315 = sshll.u32 %s304, 4
          %s316 = int_to_ptr.vmem [resolvable:$true] %s315
          %318 = dma.vmem_to_hbm [thread:$0]  %s316, 256, %s313, %s301
        $region40: #{tpu_custom_call.1} parent=31 // pred_fallthru
          _
      $region32: #{tpu_custom_call.1} parent=5 // pred_fallthru
        _
      %p319 = scmp.le.s32.totalorder 2, %s15
      // Predicated region
      $region41: #{tpu_custom_call.1} parent=5 // pred_check
        %p320 = pneg %p319
      $region42: #{tpu_custom_call.1} parent=5 // pred_check_branch
        %322 = sbr.rel (%p320) target = $region44
      $region43: #{tpu_custom_call.1} parent=5 // pred_region
        %s323 = ssub.s32 %s15, 2
        // Predicated region
        $region45: #{tpu_custom_call.1} parent=43 // pred_check
          %p324 = pneg %p112
        $region46: #{tpu_custom_call.1} parent=43 // pred_check_branch
          %326 = sbr.rel (%p324) target = $region48
        $region47: #{tpu_custom_call.1} parent=43 // pred_region
          %s327 = sand.u32 %s97, 1
          %s328 = scalar_lea.sflag [#allocation4], %s327
          %s329 = sand.u32 %s97, 1
          %s330 = smul.addr %s329, 16
          %s331 = scalar_lea.vmem [#allocation5], %s330
          %332 = dma.done %s328, 256
        $region48: #{tpu_custom_call.1} parent=43 // pred_fallthru
          _
      $region44: #{tpu_custom_call.1} parent=5 // pred_fallthru
        _
    $region6: #{tpu_custom_call.1} parent=1 // loop_footer
      %s19 = sadd.s32 1, %s15
    $region7: #{tpu_custom_call.1} parent=1 // loop_footer_branch
      %14 = sbr.rel target = $region3
    $region8: #{tpu_custom_call.1} parent=1 // loop_exit
      _
    %333 = vsyncpa [#allocation3], 1
    %s334 = scalar_lea.sflag [#allocation3], 1
    %335 = vsyncpa %s334, 1
    %336 = vsyncpa [#allocation4], 1
    %s337 = scalar_lea.sflag [#allocation4], 1
    %338 = vsyncpa %s337, 1

</llo_original>
